<compile_context>
chip_gen: v5e
topology: v5e:2x2
jax: 0.10.0
libtpu: 0.0.40
codegen_flags: <defaults>
</compile_context>

<pallas_src>
import functools

import jax
import jax.numpy as jnp
from jax.experimental import pallas as pl
from jax.experimental.pallas import tpu as pltpu

_LANE = 128      # vreg lane width
_SUBLANE = 8     # vreg sublane count


def _round_up(n: int, m: int) -> int:
    return ((n + m - 1) // m) * m


def _fcnn_kernel(x_ref, w1_ref, b1_ref, w2_ref, b2_ref, o_ref):
    """One batch tile: relu(x[:, 0, :] @ W1 + b1) @ W2p + b2p, all in VMEM.

    x_ref : (TB, S, D)    f32   (first-token select done here, in VMEM)
    w1_ref: (D, H)        f32
    b1_ref: (1, H)        f32
    w2_ref: (H, O_pad)    f32   (O padded to 128 lanes)
    b2_ref: (1, O_pad)    f32
    o_ref : (TB, O_pad)   f32   (lane-dense, unmasked store)
    """
    x0 = x_ref[:, 0, :]                                   # (TB, D)
    h = jnp.dot(x0, w1_ref[...], preferred_element_type=jnp.float32)
    h = jnp.maximum(h + b1_ref[...], 0.0)
    out = jnp.dot(h, w2_ref[...], preferred_element_type=jnp.float32)
    o_ref[...] = (out + b2_ref[...]).astype(o_ref.dtype)


def prepare_fcnn_params(w1, b1, w2, b2):
    """One-time weight layout prep (hoist out of the per-call forward).

    Pads W2/b2 to 128 output lanes (unmasked final store) and reshapes the
    biases to (1, N).  Call once at model-load time, not per forward.
    """
    O = w2.shape[-1]
    o_pad = _round_up(O, _LANE)
    w1p = jnp.asarray(w1, jnp.float32)
    b1p = jnp.asarray(b1, jnp.float32).reshape(1, -1)
    w2p = jnp.pad(jnp.asarray(w2, jnp.float32), ((0, 0), (0, o_pad - O)))
    b2p = jnp.pad(jnp.asarray(b2, jnp.float32).reshape(1, -1),
                  ((0, 0), (0, o_pad - O)))
    return w1p, b1p, w2p, b2p


def _pick_batch_tile(batch: int, block_b: int) -> int:
    """Batch tile: big to amortize grid-step overhead, but >=2 steps when the
    batch is large so v7x's two TensorCores both get work."""
    if batch <= _SUBLANE:
        return batch                       # single tiny tile (tb == full dim)
    tb = _round_up(pl.cdiv(batch, 2), _SUBLANE)
    return min(block_b, tb)


@functools.partial(jax.jit, static_argnames=("out_features", "block_b"))
def fcnn_forward_prepared(x, w1, b1p, w2p, b2p, *, out_features, block_b=512):
    """FCNN.forward with pre-laid-out params from prepare_fcnn_params().

    x : (B, S, D) f32.  Returns (B, out_features) f32.
    """
    B, S, D = x.shape
    H = w1.shape[1]
    o_pad = w2p.shape[1]

    tb = _pick_batch_tile(B, block_b)
    grid = (pl.cdiv(B, tb),)

    flops = 2 * B * H * (D + o_pad)
    bytes_accessed = 4 * (grid[0] * tb * S * D          # x tiles
                          + D * H + H + H * o_pad + o_pad   # weights/biases
                          + B * o_pad)                  # output
    cost = pl.CostEstimate(flops=flops, transcendentals=0,
                           bytes_accessed=bytes_accessed)

    out = pl.pallas_call(
        _fcnn_kernel,
        out_shape=jax.ShapeDtypeStruct((B, o_pad), jnp.float32),
        grid_spec=pltpu.PrefetchScalarGridSpec(
            num_scalar_prefetch=0,
            grid=grid,
            in_specs=[
                # x tiled over batch only; trailing (S, D) kept whole so the
                # block satisfies the (8, 128) constraint exactly.
                pl.BlockSpec((tb, S, D), lambda i: (i, 0, 0)),
                pl.BlockSpec((D, H), lambda i: (0, 0)),       # weights resident
                pl.BlockSpec((1, H), lambda i: (0, 0)),
                pl.BlockSpec((H, o_pad), lambda i: (0, 0)),
                pl.BlockSpec((1, o_pad), lambda i: (0, 0)),
            ],
            out_specs=pl.BlockSpec((tb, o_pad), lambda i: (i, 0)),
        ),
        compiler_params=pltpu.CompilerParams(
            # Batch tiles are independent -> shard across cores (v7x megacore).
            dimension_semantics=("parallel",),
        ),
        cost_estimate=cost,
    )(x, w1, b1p, w2p, b2p)

    # Only the cheap lane slice remains (O=11 of 128 padded lanes).
    return out[:, :out_features]


def fcnn_forward(x, w1, b1, w2, b2, *, block_b=512):
    """Convenience one-shot API: prep (per call!) + kernel.  Prefer calling
    prepare_fcnn_params() once and fcnn_forward_prepared() in a loop."""
    O = w2.shape[-1]
    params = prepare_fcnn_params(w1, b1, w2, b2)
    return fcnn_forward_prepared(x, *params, out_features=O, block_b=block_b)


def fcnn_reference(x, w1, b1, w2, b2):
    x0 = x[:, 0, :]
    h = jnp.maximum(x0 @ w1 + b1.reshape(1, -1), 0.0)
    return h @ w2 + b2.reshape(1, -1)


if __name__ == "__main__":
    # Small shapes consistent with the module: batch=2, seq=8, input_size=32,
    # hidden_size=32, output_size=11.
    B, S, D, H, O = 2, 8, 32, 32, 11

    key = jax.random.PRNGKey(0)
    kx, k1, kb1, k2, kb2 = jax.random.split(key, 5)

    x = jax.random.normal(kx, (B, S, D), dtype=jnp.float32)
    # Deterministic synthetic parameter init (not a checkpoint load).
    w1 = jax.random.normal(k1, (D, H), dtype=jnp.float32) * (1.0 / jnp.sqrt(D))
    b1 = jax.random.normal(kb1, (H,), dtype=jnp.float32) * 0.01
    w2 = jax.random.normal(k2, (H, O), dtype=jnp.float32) * (1.0 / jnp.sqrt(H))
    b2 = jax.random.normal(kb2, (O,), dtype=jnp.float32) * 0.01

    # Weight layout prep hoisted out of the forward (done once).
    params = prepare_fcnn_params(w1, b1, w2, b2)

    out = fcnn_forward_prepared(x, *params, out_features=O)
    out = jax.block_until_ready(out)

    ref = fcnn_reference(x, w1, b1, w2, b2)
    assert out.shape == (B, O), out.shape
    assert jnp.allclose(out, ref, atol=1e-5, rtol=1e-5), "mismatch vs reference"

    print("KERNEL_OK")
</pallas_src>

<mosaic_0001>
module attributes {stable_mosaic.version = 11 : i64} {
  func.func @_fcnn_kernel(%arg0: i32, %arg1: memref<2x8x32xf32, #tpu.memory_space<vmem>>, %arg2: memref<32x32xf32, #tpu.memory_space<vmem>>, %arg3: memref<1x32xf32, #tpu.memory_space<vmem>>, %arg4: memref<32x128xf32, #tpu.memory_space<vmem>>, %arg5: memref<1x128xf32, #tpu.memory_space<vmem>>, %arg6: memref<2x128xf32, #tpu.memory_space<vmem>>) attributes {dimension_semantics = [#tpu.dimension_semantics<parallel>], iteration_bounds = array<i64: 1>, scalar_prefetch = 0 : i64, scratch_operands = 0 : i64, tpu.core_type = #tpu.core_type<tc>, window_params = [{transform_indices = @transform_0, window_bounds = array<i64: 2, 8, 32>}, {pipeline_mode = #tpu.pipeline_mode<synchronous>, transform_indices = @transform_1, window_bounds = array<i64: 32, 32>}, {pipeline_mode = #tpu.pipeline_mode<synchronous>, transform_indices = @transform_2, window_bounds = array<i64: 1, 32>}, {pipeline_mode = #tpu.pipeline_mode<synchronous>, transform_indices = @transform_3, window_bounds = array<i64: 32, 128>}, {pipeline_mode = #tpu.pipeline_mode<synchronous>, transform_indices = @transform_4, window_bounds = array<i64: 1, 128>}, {transform_indices = @transform_5, window_bounds = array<i64: 2, 128>}]} {
    %c0 = arith.constant 0 : index
    %c0_0 = arith.constant 0 : index
    %c0_1 = arith.constant 0 : index
    %0 = vector.load %arg1[%c0, %c0_0, %c0_1] : memref<2x8x32xf32, #tpu.memory_space<vmem>>, vector<2x1x32xf32>
    %1 = vector.shape_cast %0 : vector<2x1x32xf32> to vector<2x32xf32>
    %c0_2 = arith.constant 0 : index
    %c0_3 = arith.constant 0 : index
    %2 = vector.load %arg2[%c0_2, %c0_3] : memref<32x32xf32, #tpu.memory_space<vmem>>, vector<32x32xf32>
    %cst = arith.constant dense<0.000000e+00> : vector<2x32xf32>
    %3 = tpu.matmul %1, %2, %cst {dimension_numbers = #tpu.dot_dimension_numbers<[1], [0], [0], [1], [0, 0, 1, 1], [], []>} : vector<2x32xf32>, vector<32x32xf32>, vector<2x32xf32> -> vector<2x32xf32>
    %c0_4 = arith.constant 0 : index
    %c0_5 = arith.constant 0 : index
    %4 = vector.load %arg3[%c0_4, %c0_5] : memref<1x32xf32, #tpu.memory_space<vmem>>, vector<1x32xf32>
    %5 = vector.broadcast %4 : vector<1x32xf32> to vector<2x32xf32>
    %6 = arith.addf %3, %5 : vector<2x32xf32>
    %cst_6 = arith.constant 0.000000e+00 : f32
    %7 = vector.broadcast %cst_6 : f32 to vector<2x32xf32>
    %8 = arith.maximumf %6, %7 : vector<2x32xf32>
    %c0_7 = arith.constant 0 : index
    %c0_8 = arith.constant 0 : index
    %9 = vector.load %arg4[%c0_7, %c0_8] : memref<32x128xf32, #tpu.memory_space<vmem>>, vector<32x128xf32>
    %cst_9 = arith.constant dense<0.000000e+00> : vector<2x128xf32>
    %10 = tpu.matmul %8, %9, %cst_9 {dimension_numbers = #tpu.dot_dimension_numbers<[1], [0], [0], [1], [0, 0, 1, 1], [], []>} : vector<2x32xf32>, vector<32x128xf32>, vector<2x128xf32> -> vector<2x128xf32>
    %c0_10 = arith.constant 0 : index
    %c0_11 = arith.constant 0 : index
    %11 = vector.load %arg5[%c0_10, %c0_11] : memref<1x128xf32, #tpu.memory_space<vmem>>, vector<1x128xf32>
    %12 = vector.broadcast %11 : vector<1x128xf32> to vector<2x128xf32>
    %13 = arith.addf %10, %12 : vector<2x128xf32>
    %c0_12 = arith.constant 0 : index
    %c0_13 = arith.constant 0 : index
    %14 = vector.load %arg6[%c0_12, %c0_13] : memref<2x128xf32, #tpu.memory_space<vmem>>, vector<2x128xf32>
    tpu.vector_store %arg6[%c0_12, %c0_13], %13 {strides = array<i32>} : memref<2x128xf32, #tpu.memory_space<vmem>>, vector<2x128xf32>,
    return
  }
  func.func @transform_0(%arg0: i32) -> (i32, i32, i32) {
    %c0_i32 = arith.constant 0 : i32
    %c0_i32_0 = arith.constant 0 : i32
    %c0_i32_1 = arith.constant 0 : i32
    return %arg0, %c0_i32, %c0_i32_0 : i32, i32, i32
  }
  func.func @transform_1(%arg0: i32) -> (i32, i32) {
    %c0_i32 = arith.constant 0 : i32
    %c0_i32_0 = arith.constant 0 : i32
    %c0_i32_1 = arith.constant 0 : i32
    return %c0_i32, %c0_i32_0 : i32, i32
  }
  func.func @transform_2(%arg0: i32) -> (i32, i32) {
    %c0_i32 = arith.constant 0 : i32
    %c0_i32_0 = arith.constant 0 : i32
    %c0_i32_1 = arith.constant 0 : i32
    return %c0_i32, %c0_i32_0 : i32, i32
  }
  func.func @transform_3(%arg0: i32) -> (i32, i32) {
    %c0_i32 = arith.constant 0 : i32
    %c0_i32_0 = arith.constant 0 : i32
    %c0_i32_1 = arith.constant 0 : i32
    return %c0_i32, %c0_i32_0 : i32, i32
  }
  func.func @transform_4(%arg0: i32) -> (i32, i32) {
    %c0_i32 = arith.constant 0 : i32
    %c0_i32_0 = arith.constant 0 : i32
    %c0_i32_1 = arith.constant 0 : i32
    return %c0_i32, %c0_i32_0 : i32, i32
  }
  func.func @transform_5(%arg0: i32) -> (i32, i32) {
    %c0_i32 = arith.constant 0 : i32
    %c0_i32_0 = arith.constant 0 : i32
    return %arg0, %c0_i32 : i32, i32
  }
}

</mosaic_0001>

<llo_original>
// kernel: fcnn_forward_prepared.1
$region0: #{fcnn_forward_prepared.1}
  #allocation0 [shape = 'u32[]', space=smem, size = 0x4, offset = 0x4, fixed_abs, tag = 'smem constant byte address 0x4 - core index']
  #allocation1 [shape = 'u32[72,128]{1,0:T(1,128)}', space=vmem, size = 0x9000, scoped, tag = 'internal scratch']
  %s0 = inlined_call_operand.hbm [shape: f32[2,8,32], index: 0, kind: input, shape index: {}]
  %s1 = inlined_call_operand.hbm [shape: f32[32,32], index: 1, kind: input, shape index: {}]
  %s2 = inlined_call_operand.vmem [shape: f32[1,32], index: 2, kind: input, shape index: {}]
  %s3 = inlined_call_operand.hbm [shape: f32[32,128], index: 3, kind: input, shape index: {}]
  %s4 = inlined_call_operand.vmem [shape: f32[1,128], index: 4, kind: input, shape index: {}]
  %s5 = inlined_call_operand.hbm [shape: f32[2,128], index: 5, kind: output, shape index: {}]
  %s6 = sld [smem:[#allocation0]]
  $region42: #{fcnn_forward_prepared.1} parent=0
    _
  %s8 = ssub.s32 1, %s6
  %s9 = scalar_select 0, %s8, %s6
  $region1: #{fcnn_forward_prepared.1} parent=0
    #allocation2 [shape = 'u8[8192]{0}', space=vmem, size = 0x2000, scoped, tag = 'input window, operand 0, single buffered']
    #allocation3 [shape = 's32[1]{0}', space=sflag, size = 0x4, scoped, tag = 'scoped memory for fcnn_forward_prepared.1']
    #allocation4 [shape = 's32[1]{0}', space=sflag, size = 0x4, scoped, tag = 'scoped memory for fcnn_forward_prepared.1']
    #allocation5 [shape = 'u8[16384]{0}', space=vmem, size = 0x4000, scoped, tag = 'input window, operand 1, single buffered']
    #allocation6 [shape = 's32[1]{0}', space=sflag, size = 0x4, scoped, tag = 'scoped memory for fcnn_forward_prepared.1']
    #allocation7 [shape = 'u8[16384]{0}', space=vmem, size = 0x4000, scoped, tag = 'input window, operand 3, single buffered']
    #allocation8 [shape = 'u8[1024]{0}', space=vmem, size = 0x400, scoped, tag = 'output window, operand 0, single buffered']
    %10 = vsyncpa [#allocation3], 0
    %11 = vsyncpa [#allocation6], 0
    %12 = vsyncpa [#allocation4], 0
    // Predicated region
    $region2: #{fcnn_forward_prepared.1} parent=1 // pred_check
      _
    $region3: #{fcnn_forward_prepared.1} parent=1 // pred_check_branch
      %14 = sbr.rel (0) target = $region5
    $region4: #{fcnn_forward_prepared.1} parent=1 // pred_region
      %16 = vsyncadd [#allocation3], 0
      %s17 = sshll.u32 %s0, 4
      %s18 = int_to_ptr.hbm [resolvable:$true] %s17
      %s19 = sshll.u32 [#allocation2], 4
      %s20 = int_to_ptr.vmem [resolvable:$true] %s19
      %25 = dma.hbm_to_vmem [thread:$0]  %s18, 256, %s20, [#allocation3], 128, 128, 8
    $region5: #{fcnn_forward_prepared.1} parent=1 // pred_fallthru
      _
    // Predicated region
    $region6: #{fcnn_forward_prepared.1} parent=1 // pred_check
      _
    $region7: #{fcnn_forward_prepared.1} parent=1 // pred_check_branch
      %27 = sbr.rel (0) target = $region9
    $region8: #{fcnn_forward_prepared.1} parent=1 // pred_region
      %29 = vsyncadd [#allocation6], 0
      %s30 = sshll.u32 %s1, 4
      %s31 = int_to_ptr.hbm [resolvable:$true] %s30
      %s32 = sshll.u32 [#allocation5], 4
      %s33 = int_to_ptr.vmem [resolvable:$true] %s32
      %38 = dma.hbm_to_vmem [thread:$0]  %s31, 512, %s33, [#allocation6], 128, 128, 8
    $region9: #{fcnn_forward_prepared.1} parent=1 // pred_fallthru
      _
    // Predicated region
    $region10: #{fcnn_forward_prepared.1} parent=1 // pred_check
      _
    $region11: #{fcnn_forward_prepared.1} parent=1 // pred_check_branch
      %40 = sbr.rel (0) target = $region13
    $region12: #{fcnn_forward_prepared.1} parent=1 // pred_region
      _
    $region13: #{fcnn_forward_prepared.1} parent=1 // pred_fallthru
      _
    // Predicated region
    $region14: #{fcnn_forward_prepared.1} parent=1 // pred_check
      _
    $region15: #{fcnn_forward_prepared.1} parent=1 // pred_check_branch
      %42 = sbr.rel (0) target = $region17
    $region16: #{fcnn_forward_prepared.1} parent=1 // pred_region
      %44 = vsyncadd [#allocation6], 0
      %s45 = sshll.u32 %s3, 4
      %s46 = int_to_ptr.hbm [resolvable:$true] %s45
      %s47 = sshll.u32 [#allocation7], 4
      %s48 = int_to_ptr.vmem [resolvable:$true] %s47
      %53 = dma.hbm_to_vmem [thread:$0]  %s46, 512, %s48, [#allocation6], 128, 128, 8
    $region17: #{fcnn_forward_prepared.1} parent=1 // pred_fallthru
      _
    // Predicated region
    $region18: #{fcnn_forward_prepared.1} parent=1 // pred_check
      _
    $region19: #{fcnn_forward_prepared.1} parent=1 // pred_check_branch
      %55 = sbr.rel (0) target = $region21
    $region20: #{fcnn_forward_prepared.1} parent=1 // pred_region
      _
    $region21: #{fcnn_forward_prepared.1} parent=1 // pred_fallthru
      _
    // Predicated region
    $region22: #{fcnn_forward_prepared.1} parent=1 // pred_check
      _
    $region23: #{fcnn_forward_prepared.1} parent=1 // pred_check_branch
      %57 = sbr.rel (0) target = $region25
    $region24: #{fcnn_forward_prepared.1} parent=1 // pred_region
      %59 = dma.done [#allocation3], 256
    $region25: #{fcnn_forward_prepared.1} parent=1 // pred_fallthru
      _
    // Predicated region
    $region26: #{fcnn_forward_prepared.1} parent=1 // pred_check
      _
    $region27: #{fcnn_forward_prepared.1} parent=1 // pred_check_branch
      %61 = sbr.rel (0) target = $region29
    $region28: #{fcnn_forward_prepared.1} parent=1 // pred_region
      %63 = dma.done [#allocation6], 512
    $region29: #{fcnn_forward_prepared.1} parent=1 // pred_fallthru
      _
    // Predicated region
    $region30: #{fcnn_forward_prepared.1} parent=1 // pred_check
      _
    $region31: #{fcnn_forward_prepared.1} parent=1 // pred_check_branch
      %65 = sbr.rel (0) target = $region33
    $region32: #{fcnn_forward_prepared.1} parent=1 // pred_region
      %67 = dma.done [#allocation6], 512
    $region33: #{fcnn_forward_prepared.1} parent=1 // pred_fallthru
      _
    %v68 = vld [vmem:[#allocation2] sm:$0x1]
    %v69 = vld [vmem:[#allocation2 + $0x8] sm:$0x1]
    %v70 = vld [vmem:[#allocation5] sm:$0xff]
    %v71 = vld [vmem:[#allocation5 + $0x8] sm:$0xff]
    %v72 = vld [vmem:[#allocation5 + $0x10] sm:$0xff]
    %v73 = vld [vmem:[#allocation5 + $0x18] sm:$0xff]
    %v74 = vld [vmem:[%s2] sm:$0x1]
    %v76 = vperm.slane %v74, 0
    %v80 = vrot.slane %v69, 7
    %vm81 = vcmask 1041409
    %v82 = vsel %vm81, %v80, %v68
    %vm83 = vcmask 261120
    %v84 = vsel %vm83, %v82, 0
    %86 = vmatpush.msra.mxu0 0.0
    %87 = vmatpush.msra.mxu0 0.0
    %88 = vmatpush.msra.mxu0 0.0
    %89 = vmatpush.msra.mxu0 0.0
    %90 = vmatpush.msra.mxu0 0.0
    %91 = vmatpush.msra.mxu0 0.0
    %92 = vmatpush.msra.mxu0 0.0
    %93 = vmatpush.msra.mxu0 0.0
    %94 = vmatpush.msra.mxu0 0.0
    %95 = vmatpush.msra.mxu0 0.0
    %96 = vmatpush.msra.mxu0 0.0
    %97 = vmatpush.msra.mxu0 0.0
    %98 = vmatpush.msra.mxu0 %v73
    %99 = vmatpush.msra.mxu0 %v72
    %100 = vmatpush.msra.mxu0 %v71
    %101 = vmatpush.msra.mxu0 %v70
    %102 = vmatmul.f32.gmra.mxu0 %v84
    %v103 = vpop.f32.mrf.mxu0
    %v104 = vadd.f32 %v76, %v103
    %105 = vdwg.mxu0
    %v106 = vmax.f32 %v104, 0.0
    %v107 = vld [vmem:[#allocation7] sm:$0xff]
    %v108 = vld [vmem:[#allocation7 + $0x8] sm:$0xff]
    %v109 = vld [vmem:[#allocation7 + $0x10] sm:$0xff]
    %v110 = vld [vmem:[#allocation7 + $0x18] sm:$0xff]
    %v111 = vld [vmem:[%s4] sm:$0x1]
    %v113 = vperm.slane %v111, 0
    %v116 = vsel %vm83, %v106, 0
    %118 = vmatpush.msra.mxu0 0.0
    %119 = vmatpush.msra.mxu0 0.0
    %120 = vmatpush.msra.mxu0 0.0
    %121 = vmatpush.msra.mxu0 0.0
    %122 = vmatpush.msra.mxu0 0.0
    %123 = vmatpush.msra.mxu0 0.0
    %124 = vmatpush.msra.mxu0 0.0
    %125 = vmatpush.msra.mxu0 0.0
    %126 = vmatpush.msra.mxu0 0.0
    %127 = vmatpush.msra.mxu0 0.0
    %128 = vmatpush.msra.mxu0 0.0
    %129 = vmatpush.msra.mxu0 0.0
    %130 = vmatpush.msra.mxu0 %v110
    %131 = vmatpush.msra.mxu0 %v109
    %132 = vmatpush.msra.mxu0 %v108
    %133 = vmatpush.msra.mxu0 %v107
    %134 = vmatmul.f32.gmra.mxu0 %v116
    %v135 = vpop.f32.mrf.mxu0
    %v136 = vadd.f32 %v113, %v135
    %137 = vdwg.mxu0
    %138 = vst [vmem:[#allocation8] sm:$0x3] %v136
    // Predicated region
    $region34: #{fcnn_forward_prepared.1} parent=1 // pred_check
      _
    $region35: #{fcnn_forward_prepared.1} parent=1 // pred_check_branch
      %140 = sbr.rel (0) target = $region37
    $region36: #{fcnn_forward_prepared.1} parent=1 // pred_region
      %142 = vsyncadd [#allocation4], 0
      %s144 = sshll.u32 [#allocation8], 4
      %s145 = int_to_ptr.vmem [resolvable:$true] %s144
      %s146 = sshll.u32 %s5, 4
      %s147 = int_to_ptr.hbm [resolvable:$true] %s146
      %149 = dma.vmem_to_hbm [thread:$0]  %s145, 32, %s147, [#allocation4]
    $region37: #{fcnn_forward_prepared.1} parent=1 // pred_fallthru
      _
    // Predicated region
    $region38: #{fcnn_forward_prepared.1} parent=1 // pred_check
      _
    $region39: #{fcnn_forward_prepared.1} parent=1 // pred_check_branch
      %151 = sbr.rel (0) target = $region41
    $region40: #{fcnn_forward_prepared.1} parent=1 // pred_region
      %153 = dma.done [#allocation4], 32
    $region41: #{fcnn_forward_prepared.1} parent=1 // pred_fallthru
      _
    %154 = vsyncpa [#allocation3], 1
    %155 = vsyncpa [#allocation6], 1
    %156 = vsyncpa [#allocation4], 1

</llo_original>
